<compile_context>
chip_gen: v7x
topology: tpu7x:2x2x1
jax: 0.10.0
libtpu: 0.0.40
codegen_flags: <defaults>
</compile_context>

<pallas_src>
import functools

import jax
import jax.numpy as jnp
from jax.experimental import pallas as pl
from jax.experimental.pallas import tpu as pltpu  # noqa: F401  (TPU backend)


def _weight_kernel(u_ref, o_ref, *, emb_dim):
    # u_ref / o_ref: (1, P) f32 in VMEM, P = lane-dense padded width.
    P = o_ref.shape[1]

    u = u_ref[...]                                   # uniform(-5, 0) samples (padded lanes = 0)

    # --- exp + softmax (no max-subtract needed: exp(u) in (e^-5, 1]) -----
    lam = jnp.exp(u)                                 # torch.exp(uniform)
    p = jnp.exp(lam)                                 # softmax numerator, <= e

    if emb_dim < P:                                  # compile-time branch: mask padded lanes
        lane = jax.lax.broadcasted_iota(jnp.int32, (1, P), dimension=1)
        p = jnp.where(lane < emb_dim, p, 0.0)

    denom = jnp.sum(p, axis=-1, keepdims=True)
    o_ref[...] = p / denom                           # exact normalization


@functools.partial(jax.jit, static_argnums=(1,))
def _weight_forward_impl(key, emb_dim):
    P = ((emb_dim + 127) // 128) * 128               # lane-dense padded width

    # Fresh uniform(-5, 0) draw every call (matches init.uniform_ per forward).
    u = jax.random.uniform(key, (1, emb_dim), minval=-5.0, maxval=0.0,
                           dtype=jnp.float32)
    if emb_dim < P:
        u = jnp.pad(u, ((0, 0), (0, P - emb_dim)))   # padded lanes masked in-kernel

    out = pl.pallas_call(
        functools.partial(_weight_kernel, emb_dim=emb_dim),
        out_shape=jax.ShapeDtypeStruct((1, P), jnp.float32),
        in_specs=[pl.BlockSpec((1, P), lambda: (0, 0))],
        out_specs=pl.BlockSpec((1, P), lambda: (0, 0)),
    )(u)
    return out[0, :emb_dim]


def weight_forward(key, emb_dim):
    """Weight.forward(): fresh uniform(-5,0) draw -> softmax(exp(u)), shape (emb_dim,)."""
    return _weight_forward_impl(key, emb_dim)


if __name__ == "__main__":
    emb_dim = 32

    key = jax.random.PRNGKey(0)
    key_other = jax.random.fold_in(key, 1)

    lam = jax.block_until_ready(weight_forward(key, emb_dim))

    # sanity: valid softmax over exp(uniform(-5, 0)) samples
    assert lam.shape == (emb_dim,)
    assert lam.dtype == jnp.float32
    assert bool(jnp.all(jnp.isfinite(lam)))
    assert bool(jnp.all(lam > 0.0))
    assert jnp.allclose(jnp.sum(lam), 1.0, atol=1e-5)
    # exp(u) spans at most (e^-5, 1] => softmax ratio bounded by e^(1 - e^-5) ~ 2.70
    ratio = float(jnp.max(lam) / jnp.min(lam))
    assert ratio < 2.75

    # reference check: same math in plain jnp with the same key
    u_ref = jax.random.uniform(key, (1, emb_dim), minval=-5.0, maxval=0.0,
                               dtype=jnp.float32)[0]
    lam_ref = jax.nn.softmax(jnp.exp(u_ref), axis=0)
    assert jnp.allclose(lam, lam_ref, atol=1e-6)

    # re-sampling semantics: same key reproduces, different key differs
    lam_same = jax.block_until_ready(weight_forward(key, emb_dim))
    lam_diff = jax.block_until_ready(weight_forward(key_other, emb_dim))
    assert bool(jnp.allclose(lam, lam_same))
    assert not bool(jnp.allclose(lam, lam_diff))

    print("KERNEL_OK")
</pallas_src>

<mosaic_0001>
module attributes {stable_mosaic.version = 11 : i64} {
  func.func @_weight_kernel(%arg0: memref<1x128xf32, #tpu.memory_space<vmem>>, %arg1: memref<1x128xf32, #tpu.memory_space<vmem>>) attributes {dimension_semantics = [], scalar_prefetch = 0 : i64, scratch_operands = 0 : i64, tpu.core_type = #tpu.core_type<tc>} {
    %c0 = arith.constant 0 : index
    %c0_0 = arith.constant 0 : index
    %0 = vector.load %arg0[%c0, %c0_0] : memref<1x128xf32, #tpu.memory_space<vmem>>, vector<1x128xf32>
    %1 = math.exp %0 : vector<1x128xf32>
    %2 = math.exp %1 : vector<1x128xf32>
    %3 = tpu.iota {dimensions = array<i32: 1>} : vector<1x128xi32>
    %c32_i32 = arith.constant 32 : i32
    %4 = vector.broadcast %c32_i32 : i32 to vector<1x128xi32>
    %5 = arith.cmpi slt, %3, %4 : vector<1x128xi32>
    %cst = arith.constant 0.000000e+00 : f32
    %6 = vector.broadcast %cst : f32 to vector<1x128xf32>
    %7 = arith.select %5, %2, %6 : vector<1x128xi1>, vector<1x128xf32>
    %cst_1 = arith.constant dense<0.000000e+00> : vector<1xf32>
    %8 = vector.multi_reduction <add>, %7, %cst_1 [1] : vector<1x128xf32> to vector<1xf32>
    %9 = vector.shape_cast %8 : vector<1xf32> to vector<1x1xf32>
    %10 = vector.broadcast %9 : vector<1x1xf32> to vector<1x128xf32>
    %11 = arith.divf %7, %10 : vector<1x128xf32>
    %c0_2 = arith.constant 0 : index
    %c0_3 = arith.constant 0 : index
    %12 = vector.load %arg1[%c0_2, %c0_3] : memref<1x128xf32, #tpu.memory_space<vmem>>, vector<1x128xf32>
    tpu.vector_store %arg1[%c0_2, %c0_3], %11 {strides = array<i32>} : memref<1x128xf32, #tpu.memory_space<vmem>>, vector<1x128xf32>,
    return
  }
}

</mosaic_0001>

<llo_original>
// kernel: _weight_forward_impl.1
$region0: #{_weight_forward_impl.1}
  #allocation0 [shape = 'u32[]', space=smem, size = 0x4, offset = 0x4, fixed_abs, tag = 'smem constant byte address 0x4 - core index']
  #allocation1 [shape = 'u32[144,128]{1,0:T(1,128)}', space=vmem, size = 0x12000, scoped, tag = 'internal scratch']
  %s0 = inlined_call_operand.vmem [shape: f32[1,128], index: 0, kind: input, shape index: {}]
  %s1 = inlined_call_operand.vmem [shape: f32[1,128], index: 1, kind: output, shape index: {}]
  %s2 = sld [smem:[#allocation0]]
  $region14: #{_weight_forward_impl.1} parent=0
    _
  %s4 = ssub.s32 1, %s2
  %s5 = scalar_select 0, %s4, %s2
  // Predicated region
  $region2: #{_weight_forward_impl.1} parent=0 // pred_check
    _
  $region3: #{_weight_forward_impl.1} parent=0 // pred_check_branch
    %7 = sbr.rel (0) target = $region5
  $region4: #{_weight_forward_impl.1} parent=0 // pred_region
    _
  $region5: #{_weight_forward_impl.1} parent=0 // pred_fallthru
    _
  %v8 = vld [vmem:[%s0] sm:$0x1]
  %v9 = vmul.f32 %v8, 1.442695
  %v10 = vpow.pop %v9
  %v11 = vmul.f32 %v10, 1.442695
  %v12 = vpow.pop %v11
  %v13 = vlaneseq
  %v14 = vand.u32 %v13, 127
  %vm15 = vcmp.lt.s32.totalorder %v14, 32
  %v16 = vsel %vm15, %v12, 0.0
  %vm17 = vcmask 1040384
  %v18 = vsel %vm17, %v16, 0.0
  %19 = vadd.xlane.f32.xlu0 %v18
  %v20 = vpop.xlane.xlu0 %19
  %v21 = vrcp.pop %v20
  %v22 = vmul.f32 %v16, %v21
  %23 = vst [vmem:[%s1] sm:$0x1] %v22
  // Predicated region
  $region6: #{_weight_forward_impl.1} parent=0 // pred_check
    _
  $region7: #{_weight_forward_impl.1} parent=0 // pred_check_branch
    %25 = sbr.rel (0) target = $region9
  $region8: #{_weight_forward_impl.1} parent=0 // pred_region
    _
  $region9: #{_weight_forward_impl.1} parent=0 // pred_fallthru
    _
  // Predicated region
  $region10: #{_weight_forward_impl.1} parent=0 // pred_check
    _
  $region11: #{_weight_forward_impl.1} parent=0 // pred_check_branch
    %27 = sbr.rel (0) target = $region13
  $region12: #{_weight_forward_impl.1} parent=0 // pred_region
    _
  $region13: #{_weight_forward_impl.1} parent=0 // pred_fallthru
    _

</llo_original>
